<compile_context>
chip_gen: v7x
topology: tpu7x:2x2x1
jax: 0.10.0
libtpu: 0.0.40
codegen_flags: <defaults>
</compile_context>

<pallas_src>
import jax
import jax.numpy as jnp
from jax.experimental import pallas as pl
from jax.experimental.pallas import tpu as pltpu


def mlp_kernel(x_ref, w1_ref, b1_ref, w2_ref, b2_ref, o_ref):
    # x_ref : (TB, D_in)  f32   w1_ref: (D_in, H)  bf16   b1_ref: (1, H)     f32
    # w2_ref: (H, D_out)  bf16  b2_ref: (1, D_out) f32    o_ref : (TB, D_out) f32
    x = x_ref[...].astype(w1_ref.dtype)                       # in-kernel cast (VPU)
    h = jnp.dot(x, w1_ref[...],
                preferred_element_type=jnp.float32)            # MXU, f32 acc
    h = jnp.maximum(h + b1_ref[...], 0.0)                      # f32 bias + ReLU (VPU)
    y = jnp.dot(h.astype(w2_ref.dtype), w2_ref[...],
                preferred_element_type=jnp.float32)            # MXU, f32 acc
    o_ref[...] = (y + b2_ref[...]).astype(o_ref.dtype)         # unpadded store


def _resident_spec(shape):
    """Grid-invariant operand (constant index_map); single-buffered if supported."""
    index_map = lambda i: (0,) * len(shape)
    try:
        return pl.BlockSpec(shape, index_map, pipeline_mode=pl.Buffered(1))
    except (TypeError, AttributeError):  # API without pipeline_mode / Buffered
        return pl.BlockSpec(shape, index_map)


def mock_model_forward(x, w1, b1, w2, b2, *, tb=2048,
                       compute_dtype=jnp.bfloat16):
    """x: [B, D_in]; w1: [D_in, H]; b1: [H]; w2: [H, D_out]; b2: [D_out].

    Weights are stored pre-transposed ([fan_in, fan_out]) so the kernel does
    plain x @ W (== PyTorch nn.Linear's x @ W.T). Returns f32 [B, D_out].
    """
    B, D_in = x.shape
    H = w1.shape[1]
    D_out = w2.shape[1]
    SUB = 8  # sublane granularity for the batch (second-minor) dim

    # Batch tile: large (amortize per-step overhead), but clamped to ~B/2
    # rounded to sublanes so the "parallel" axis has >=2 steps whenever B > 8
    # (both v7x TensorCores get a tile). No padded copy of x is materialized:
    # Pallas masks the ragged last tile's writeback.
    half_b = ((-(-B // 2)) + SUB - 1) // SUB * SUB
    tb_eff = max(SUB, min(tb, half_b))
    grid = (pl.cdiv(B, tb_eff),)

    # Weights/biases are tiny and VMEM-resident across the grid: cast once.
    w1_c = w1.astype(compute_dtype)
    w2_c = w2.astype(compute_dtype)
    b1_2d = b1.reshape(1, H).astype(jnp.float32)
    b2_2d = b2.reshape(1, D_out).astype(jnp.float32)

    flops = 2 * B * (D_in * H + H * D_out)
    bytes_accessed = (x.size * x.dtype.itemsize
                      + w1_c.size * w1_c.dtype.itemsize
                      + w2_c.size * w2_c.dtype.itemsize
                      + b1_2d.size * 4 + b2_2d.size * 4
                      + B * D_out * 4)

    return pl.pallas_call(
        mlp_kernel,
        out_shape=jax.ShapeDtypeStruct((B, D_out), jnp.float32),
        grid_spec=pltpu.PrefetchScalarGridSpec(
            num_scalar_prefetch=0,
            grid=grid,
            in_specs=[
                pl.BlockSpec((tb_eff, D_in), lambda i: (i, 0)),  # x streams (dbl-buf)
                _resident_spec((D_in, H)),                       # w1 resident
                _resident_spec((1, H)),                          # b1 resident
                _resident_spec((H, D_out)),                      # w2 resident
                _resident_spec((1, D_out)),                      # b2 resident
            ],
            out_specs=pl.BlockSpec((tb_eff, D_out), lambda i: (i, 0)),
        ),
        compiler_params=pltpu.CompilerParams(
            dimension_semantics=("parallel",)),                  # megacore-shardable
        cost_estimate=pl.CostEstimate(flops=flops, transcendentals=0,
                                      bytes_accessed=bytes_accessed),
    )(x, w1_c, b1_2d, w2_c, b2_2d)


def init_params(key, input_dim=128, hidden_dim=256, output_dim=64,
                dtype=jnp.float32):
    """Deterministic PyTorch-style (uniform +/- 1/sqrt(fan_in)) init."""
    k1, k2, k3, k4 = jax.random.split(key, 4)
    bound1 = 1.0 / (input_dim ** 0.5)
    bound2 = 1.0 / (hidden_dim ** 0.5)
    # Stored already transposed: [fan_in, fan_out].
    w1 = jax.random.uniform(k1, (input_dim, hidden_dim), dtype,
                            minval=-bound1, maxval=bound1)
    b1 = jax.random.uniform(k2, (hidden_dim,), dtype,
                            minval=-bound1, maxval=bound1)
    w2 = jax.random.uniform(k3, (hidden_dim, output_dim), dtype,
                            minval=-bound2, maxval=bound2)
    b2 = jax.random.uniform(k4, (output_dim,), dtype,
                            minval=-bound2, maxval=bound2)
    return w1, b1, w2, b2


if __name__ == "__main__":
    INPUT_DIM, HIDDEN_DIM, OUTPUT_DIM = 128, 256, 64
    BATCH = 12  # not a multiple of the tile -> exercises the ragged last tile

    key = jax.random.PRNGKey(0)
    k_params, k_x = jax.random.split(key)
    w1, b1, w2, b2 = init_params(k_params, INPUT_DIM, HIDDEN_DIM, OUTPUT_DIM)
    x = jax.random.normal(k_x, (BATCH, INPUT_DIM), jnp.float32)

    # At BATCH=12 the wrapper picks tb_eff=8 -> grid=(2,): exercises batch
    # tiling, resident weights, and the masked ragged last tile.
    out = mock_model_forward(x, w1, b1, w2, b2)
    out = jax.block_until_ready(out)
    assert out.shape == (BATCH, OUTPUT_DIM)
    assert out.dtype == jnp.float32

    # Reference mirroring the kernel's arithmetic (bf16 MXU operands, f32 acc).
    xc, w1c, w2c = (a.astype(jnp.bfloat16) for a in (x, w1, w2))
    h_ref = jnp.maximum(
        jnp.dot(xc, w1c, preferred_element_type=jnp.float32) + b1, 0.0)
    ref = jnp.dot(h_ref.astype(jnp.bfloat16), w2c,
                  preferred_element_type=jnp.float32) + b2
    assert jnp.allclose(out, ref, atol=5e-3, rtol=5e-3)

    # Loose sanity check against the pure-f32 PyTorch-equivalent math.
    ref_f32 = jnp.maximum(x @ w1 + b1, 0.0) @ w2 + b2
    assert jnp.allclose(out, ref_f32, atol=5e-2, rtol=5e-2)

    print("KERNEL_OK")
</pallas_src>

<mosaic_0001>
module attributes {stable_mosaic.version = 11 : i64} {
  func.func @mlp_kernel(%arg0: i32, %arg1: memref<8x128xf32, #tpu.memory_space<vmem>>, %arg2: memref<128x256xbf16, #tpu.memory_space<vmem>>, %arg3: memref<1x256xf32, #tpu.memory_space<vmem>>, %arg4: memref<256x64xbf16, #tpu.memory_space<vmem>>, %arg5: memref<1x64xf32, #tpu.memory_space<vmem>>, %arg6: memref<8x64xf32, #tpu.memory_space<vmem>>) attributes {dimension_semantics = [#tpu.dimension_semantics<parallel>], iteration_bounds = array<i64: 2>, scalar_prefetch = 0 : i64, scratch_operands = 0 : i64, tpu.core_type = #tpu.core_type<tc>, window_params = [{transform_indices = @transform_0, window_bounds = array<i64: 8, 128>}, {pipeline_mode = #tpu.pipeline_mode<synchronous>, transform_indices = @transform_1, window_bounds = array<i64: 128, 256>}, {pipeline_mode = #tpu.pipeline_mode<synchronous>, transform_indices = @transform_2, window_bounds = array<i64: 1, 256>}, {pipeline_mode = #tpu.pipeline_mode<synchronous>, transform_indices = @transform_3, window_bounds = array<i64: 256, 64>}, {pipeline_mode = #tpu.pipeline_mode<synchronous>, transform_indices = @transform_4, window_bounds = array<i64: 1, 64>}, {transform_indices = @transform_5, window_bounds = array<i64: 8, 64>}]} {
    %c0 = arith.constant 0 : index
    %c0_0 = arith.constant 0 : index
    %0 = vector.load %arg1[%c0, %c0_0] : memref<8x128xf32, #tpu.memory_space<vmem>>, vector<8x128xf32>
    %1 = arith.truncf %0 : vector<8x128xf32> to vector<8x128xbf16>
    %c0_1 = arith.constant 0 : index
    %c0_2 = arith.constant 0 : index
    %2 = vector.load %arg2[%c0_1, %c0_2] : memref<128x256xbf16, #tpu.memory_space<vmem>>, vector<128x256xbf16>
    %cst = arith.constant dense<0.000000e+00> : vector<8x256xf32>
    %3 = tpu.matmul %1, %2, %cst {dimension_numbers = #tpu.dot_dimension_numbers<[1], [0], [0], [1], [0, 0, 1, 1], [], []>} : vector<8x128xbf16>, vector<128x256xbf16>, vector<8x256xf32> -> vector<8x256xf32>
    %c0_3 = arith.constant 0 : index
    %c0_4 = arith.constant 0 : index
    %4 = vector.load %arg3[%c0_3, %c0_4] : memref<1x256xf32, #tpu.memory_space<vmem>>, vector<1x256xf32>
    %5 = vector.broadcast %4 : vector<1x256xf32> to vector<8x256xf32>
    %6 = arith.addf %3, %5 : vector<8x256xf32>
    %cst_5 = arith.constant 0.000000e+00 : f32
    %7 = vector.broadcast %cst_5 : f32 to vector<8x256xf32>
    %8 = arith.maximumf %6, %7 : vector<8x256xf32>
    %9 = arith.truncf %8 : vector<8x256xf32> to vector<8x256xbf16>
    %c0_6 = arith.constant 0 : index
    %c0_7 = arith.constant 0 : index
    %10 = vector.load %arg4[%c0_6, %c0_7] : memref<256x64xbf16, #tpu.memory_space<vmem>>, vector<256x64xbf16>
    %cst_8 = arith.constant dense<0.000000e+00> : vector<8x64xf32>
    %11 = tpu.matmul %9, %10, %cst_8 {dimension_numbers = #tpu.dot_dimension_numbers<[1], [0], [0], [1], [0, 0, 1, 1], [], []>} : vector<8x256xbf16>, vector<256x64xbf16>, vector<8x64xf32> -> vector<8x64xf32>
    %c0_9 = arith.constant 0 : index
    %c0_10 = arith.constant 0 : index
    %12 = vector.load %arg5[%c0_9, %c0_10] : memref<1x64xf32, #tpu.memory_space<vmem>>, vector<1x64xf32>
    %13 = vector.broadcast %12 : vector<1x64xf32> to vector<8x64xf32>
    %14 = arith.addf %11, %13 : vector<8x64xf32>
    %c0_11 = arith.constant 0 : index
    %c0_12 = arith.constant 0 : index
    %15 = vector.load %arg6[%c0_11, %c0_12] : memref<8x64xf32, #tpu.memory_space<vmem>>, vector<8x64xf32>
    tpu.vector_store %arg6[%c0_11, %c0_12], %14 {strides = array<i32>} : memref<8x64xf32, #tpu.memory_space<vmem>>, vector<8x64xf32>,
    return
  }
  func.func @transform_0(%arg0: i32) -> (i32, i32) {
    %c0_i32 = arith.constant 0 : i32
    %c0_i32_0 = arith.constant 0 : i32
    return %arg0, %c0_i32 : i32, i32
  }
  func.func @transform_1(%arg0: i32) -> (i32, i32) {
    %c0_i32 = arith.constant 0 : i32
    %c0_i32_0 = arith.constant 0 : i32
    %c0_i32_1 = arith.constant 0 : i32
    return %c0_i32, %c0_i32_0 : i32, i32
  }
  func.func @transform_2(%arg0: i32) -> (i32, i32) {
    %c0_i32 = arith.constant 0 : i32
    %c0_i32_0 = arith.constant 0 : i32
    %c0_i32_1 = arith.constant 0 : i32
    return %c0_i32, %c0_i32_0 : i32, i32
  }
  func.func @transform_3(%arg0: i32) -> (i32, i32) {
    %c0_i32 = arith.constant 0 : i32
    %c0_i32_0 = arith.constant 0 : i32
    %c0_i32_1 = arith.constant 0 : i32
    return %c0_i32, %c0_i32_0 : i32, i32
  }
  func.func @transform_4(%arg0: i32) -> (i32, i32) {
    %c0_i32 = arith.constant 0 : i32
    %c0_i32_0 = arith.constant 0 : i32
    %c0_i32_1 = arith.constant 0 : i32
    return %c0_i32, %c0_i32_0 : i32, i32
  }
  func.func @transform_5(%arg0: i32) -> (i32, i32) {
    %c0_i32 = arith.constant 0 : i32
    %c0_i32_0 = arith.constant 0 : i32
    return %arg0, %c0_i32 : i32, i32
  }
}

</mosaic_0001>

<llo_original>
// kernel: tpu_custom_call.1
$region0: #{tpu_custom_call.1}
  #allocation0 [shape = 'u32[]', space=smem, size = 0x4, offset = 0x4, fixed_abs, tag = 'smem constant byte address 0x4 - core index']
  #allocation1 [shape = 'u32[144,128]{1,0:T(1,128)}', space=vmem, size = 0x12000, scoped, tag = 'internal scratch']
  %s0 = inlined_call_operand.vmem [shape: f32[12,128], index: 0, kind: input, shape index: {}]
  %s1 = inlined_call_operand.vmem [shape: bf16[128,256], index: 1, kind: input, shape index: {}]
  %s2 = inlined_call_operand.vmem [shape: f32[1,256], index: 2, kind: input, shape index: {}]
  %s3 = inlined_call_operand.vmem [shape: bf16[256,64], index: 3, kind: input, shape index: {}]
  %s4 = inlined_call_operand.vmem [shape: f32[1,64], index: 4, kind: input, shape index: {}]
  %s5 = inlined_call_operand.hbm [shape: f32[12,64], index: 5, kind: output, shape index: {}]
  %s6 = sld [smem:[#allocation0]]
  $region53: #{tpu_custom_call.1} parent=0
    _
  %s8 = ssub.s32 1, %s6
  %s9 = scalar_select 0, %s8, %s6
  $region1: #{tpu_custom_call.1} parent=0
    #allocation2 [shape = 'u8[8192]{0}', space=vmem, size = 0x2000, scoped, tag = 'output window, operand 0']
    #allocation3 [shape = 's32[2]{0}', space=sflag, size = 0x8, scoped, tag = 'scoped memory for tpu_custom_call.1']
    %10 = vsyncpa [#allocation3], 0
    %s11 = scalar_lea.sflag [#allocation3], 1
    %12 = vsyncpa %s11, 0
    loop: start=0, step=1, limit=4
    $region2: #{tpu_custom_call.1} parent=1 // loop_pre_header
      _
    $region3: #{tpu_custom_call.1} parent=1 // loop_header
      %s14 = sphi 0, %s18
      %p15 = scmp.ge.s32.totalorder %s14, 4
      %s24 = sphi 0, %s26
      %s27 = sphi 0, %s24
      %s28 = sphi 0, %s27
      %s44 = sphi 0, %s28
      %s48 = sphi 0, %s48
      %s50 = sphi 0, %s48
      %s51 = sphi 0, %s50
      %s65 = sphi 0, %s51
      %s69 = sphi 0, %s69
      %s71 = sphi 0, %s69
      %s72 = sphi 0, %s71
      %s86 = sphi 0, %s72
      %s90 = sphi 0, %s90
      %s92 = sphi 0, %s90
      %s93 = sphi 0, %s92
      %s107 = sphi 0, %s93
      %s111 = sphi 0, %s111
      %s113 = sphi 0, %s111
      %s114 = sphi 0, %s113
      %s128 = sphi 0, %s114
      %s134 = sphi 0, %s136
      %s137 = sphi 0, %s134
      %s138 = sphi 0, %s137
      %s154 = sphi 0, %s138
    $region4: #{tpu_custom_call.1} parent=1 // loop_header_branch
      %17 = sbr.rel (%p15) target = $region8
    $region5: #{tpu_custom_call.1} parent=1 // loop_body
      %s19 = ssub.s32 %s14, 1
      %s20 = ssub.s32 %s14, 2
      %s21 = sadd.s32 %s14, 1
      %s22 = ssub.s32 %s14, %s21
      %p23 = scmp.eq.s32.totalorder %s22, 0
      %s25 = sadd.s32 %s24, 1
      %s26 = scalar_select %p23, %s24, %s25
      %p29 = pneg %p23
      %p30 = scmp.eq.s32.totalorder %s14, 1
      %p31 = por %p29, %p30
      %p32 = scmp.ne.s32.totalorder %s24, %s27
      %p33 = scmp.eq.s32.totalorder %s14, 0
      %p34 = por %p32, %p33
      %p35 = scmp.ne.s32.totalorder %s24, %s27
      %p36 = scmp.eq.s32.totalorder %s19, 1
      %p37 = por %p35, %p36
      %p38 = scmp.ne.s32.totalorder %s27, %s28
      %p39 = scmp.eq.s32.totalorder %s19, 0
      %p40 = por %p38, %p39
      %p41 = scmp.ne.s32.totalorder %s27, %s28
      %p42 = scmp.eq.s32.totalorder %s20, 1
      %p43 = por %p41, %p42
      %p45 = scmp.ne.s32.totalorder %s28, %s44
      %p46 = scmp.eq.s32.totalorder %s20, 0
      %p47 = por %p45, %p46
      %s49 = sadd.s32 %s48, 1
      %p52 = scmp.eq.s32.totalorder %s14, 1
      %p53 = scmp.ne.s32.totalorder %s48, %s50
      %p54 = scmp.eq.s32.totalorder %s14, 0
      %p55 = por %p53, %p54
      %p56 = scmp.ne.s32.totalorder %s48, %s50
      %p57 = scmp.eq.s32.totalorder %s19, 1
      %p58 = por %p56, %p57
      %p59 = scmp.ne.s32.totalorder %s50, %s51
      %p60 = scmp.eq.s32.totalorder %s19, 0
      %p61 = por %p59, %p60
      %p62 = scmp.ne.s32.totalorder %s50, %s51
      %p63 = scmp.eq.s32.totalorder %s20, 1
      %p64 = por %p62, %p63
      %p66 = scmp.ne.s32.totalorder %s51, %s65
      %p67 = scmp.eq.s32.totalorder %s20, 0
      %p68 = por %p66, %p67
      %s70 = sadd.s32 %s69, 1
      %p73 = scmp.eq.s32.totalorder %s14, 1
      %p74 = scmp.ne.s32.totalorder %s69, %s71
      %p75 = scmp.eq.s32.totalorder %s14, 0
      %p76 = por %p74, %p75
      %p77 = scmp.ne.s32.totalorder %s69, %s71
      %p78 = scmp.eq.s32.totalorder %s19, 1
      %p79 = por %p77, %p78
      %p80 = scmp.ne.s32.totalorder %s71, %s72
      %p81 = scmp.eq.s32.totalorder %s19, 0
      %p82 = por %p80, %p81
      %p83 = scmp.ne.s32.totalorder %s71, %s72
      %p84 = scmp.eq.s32.totalorder %s20, 1
      %p85 = por %p83, %p84
      %p87 = scmp.ne.s32.totalorder %s72, %s86
      %p88 = scmp.eq.s32.totalorder %s20, 0
      %p89 = por %p87, %p88
      %s91 = sadd.s32 %s90, 1
      %p94 = scmp.eq.s32.totalorder %s14, 1
      %p95 = scmp.ne.s32.totalorder %s90, %s92
      %p96 = scmp.eq.s32.totalorder %s14, 0
      %p97 = por %p95, %p96
      %p98 = scmp.ne.s32.totalorder %s90, %s92
      %p99 = scmp.eq.s32.totalorder %s19, 1
      %p100 = por %p98, %p99
      %p101 = scmp.ne.s32.totalorder %s92, %s93
      %p102 = scmp.eq.s32.totalorder %s19, 0
      %p103 = por %p101, %p102
      %p104 = scmp.ne.s32.totalorder %s92, %s93
      %p105 = scmp.eq.s32.totalorder %s20, 1
      %p106 = por %p104, %p105
      %p108 = scmp.ne.s32.totalorder %s93, %s107
      %p109 = scmp.eq.s32.totalorder %s20, 0
      %p110 = por %p108, %p109
      %s112 = sadd.s32 %s111, 1
      %p115 = scmp.eq.s32.totalorder %s14, 1
      %p116 = scmp.ne.s32.totalorder %s111, %s113
      %p117 = scmp.eq.s32.totalorder %s14, 0
      %p118 = por %p116, %p117
      %p119 = scmp.ne.s32.totalorder %s111, %s113
      %p120 = scmp.eq.s32.totalorder %s19, 1
      %p121 = por %p119, %p120
      %p122 = scmp.ne.s32.totalorder %s113, %s114
      %p123 = scmp.eq.s32.totalorder %s19, 0
      %p124 = por %p122, %p123
      %p125 = scmp.ne.s32.totalorder %s113, %s114
      %p126 = scmp.eq.s32.totalorder %s20, 1
      %p127 = por %p125, %p126
      %p129 = scmp.ne.s32.totalorder %s114, %s128
      %p130 = scmp.eq.s32.totalorder %s20, 0
      %p131 = por %p129, %p130
      %s132 = ssub.s32 %s14, %s21
      %p133 = scmp.eq.s32.totalorder %s132, 0
      %s135 = sadd.s32 %s134, 1
      %s136 = scalar_select %p133, %s134, %s135
      %p139 = pneg %p133
      %p140 = scmp.eq.s32.totalorder %s14, 1
      %p141 = por %p139, %p140
      %p142 = scmp.ne.s32.totalorder %s134, %s137
      %p143 = scmp.eq.s32.totalorder %s14, 0
      %p144 = por %p142, %p143
      %p145 = scmp.ne.s32.totalorder %s134, %s137
      %p146 = scmp.eq.s32.totalorder %s19, 1
      %p147 = por %p145, %p146
      %p148 = scmp.ne.s32.totalorder %s137, %s138
      %p149 = scmp.eq.s32.totalorder %s19, 0
      %p150 = por %p148, %p149
      %p151 = scmp.ne.s32.totalorder %s137, %s138
      %p152 = scmp.eq.s32.totalorder %s20, 1
      %p153 = por %p151, %p152
      %p155 = scmp.ne.s32.totalorder %s138, %s154
      %p156 = scmp.eq.s32.totalorder %s20, 0
      %p157 = por %p155, %p156
      %p158 = scmp.le.s32.totalorder 1, %s14
      %p159 = scmp.lt.s32.totalorder %s14, 3
      %p160 = pnand %p158, %p159
      %p161 = pneg %p160
      // Predicated region
      $region9: #{tpu_custom_call.1} parent=5 // pred_check
        _
      $region10: #{tpu_custom_call.1} parent=5 // pred_check_branch
        %163 = sbr.rel (%p160) target = $region12
      $region11: #{tpu_custom_call.1} parent=5 // pred_region
        %s164 = ssub.s32 %s14, 1
        // Predicated region
        $region13: #{tpu_custom_call.1} parent=11 // pred_check
          %p165 = pneg %p61
        $region14: #{tpu_custom_call.1} parent=11 // pred_check_branch
          %167 = sbr.rel (%p165) target = $region16
        $region15: #{tpu_custom_call.1} parent=11 // pred_region
          _
        $region16: #{tpu_custom_call.1} parent=11 // pred_fallthru
          _
        // Predicated region
        $region17: #{tpu_custom_call.1} parent=11 // pred_check
          %p168 = pneg %p82
        $region18: #{tpu_custom_call.1} parent=11 // pred_check_branch
          %170 = sbr.rel (%p168) target = $region20
        $region19: #{tpu_custom_call.1} parent=11 // pred_region
          _
        $region20: #{tpu_custom_call.1} parent=11 // pred_fallthru
          _
        // Predicated region
        $region21: #{tpu_custom_call.1} parent=11 // pred_check
          %p171 = pneg %p103
        $region22: #{tpu_custom_call.1} parent=11 // pred_check_branch
          %173 = sbr.rel (%p171) target = $region24
        $region23: #{tpu_custom_call.1} parent=11 // pred_region
          _
        $region24: #{tpu_custom_call.1} parent=11 // pred_fallthru
          _
        // Predicated region
        $region25: #{tpu_custom_call.1} parent=11 // pred_check
          %p174 = pneg %p124
        $region26: #{tpu_custom_call.1} parent=11 // pred_check_branch
          %176 = sbr.rel (%p174) target = $region28
        $region27: #{tpu_custom_call.1} parent=11 // pred_region
          _
        $region28: #{tpu_custom_call.1} parent=11 // pred_fallthru
          _
      $region12: #{tpu_custom_call.1} parent=5 // pred_fallthru
        _
      %p177 = scmp.lt.s32.totalorder %s14, 2
      // Predicated region
      $region29: #{tpu_custom_call.1} parent=5 // pred_check
        %p178 = pneg %p177
      $region30: #{tpu_custom_call.1} parent=5 // pred_check_branch
        %180 = sbr.rel (%p178) target = $region32
      $region31: #{tpu_custom_call.1} parent=5 // pred_region
        // Predicated region
        $region33: #{tpu_custom_call.1} parent=31 // pred_check
          %p181 = pneg %p34
        $region34: #{tpu_custom_call.1} parent=31 // pred_check_branch
          %183 = sbr.rel (%p181) target = $region36
        $region35: #{tpu_custom_call.1} parent=31 // pred_region
          %p184 = scmp.lt.s32.totalorder %s14, 1
          %s185 = scalar_select %p184, %s14, 1
          %s186 = smul.addr %s185, 8
          %s187 = scalar_lea.vmem %s0, %s186
        $region36: #{tpu_custom_call.1} parent=31 // pred_fallthru
          _
      $region32: #{tpu_custom_call.1} parent=5 // pred_fallthru
        _
      %p188 = scmp.le.s32.totalorder 1, %s14
      %p189 = scmp.lt.s32.totalorder %s14, 3
      %p190 = pnand %p188, %p189
      %p191 = pneg %p190
      // Predicated region
      $region37: #{tpu_custom_call.1} parent=5 // pred_check
        _
      $region38: #{tpu_custom_call.1} parent=5 // pred_check_branch
        %193 = sbr.rel (%p190) target = $region40
      $region39: #{tpu_custom_call.1} parent=5 // pred_region
        %s194 = ssub.s32 %s14, 1
        %p195 = scmp.lt.s32.totalorder %s19, 1
        %s196 = scalar_select %p195, %s19, 1
        %s197 = smul.addr %s196, 8
        %s198 = scalar_lea.vmem %s0, %s197
        %p199 = pneg %p40
        %p200 = pneg %p37
        %p201 = pneg %p61
        %p202 = pneg %p58
        %p203 = pneg %p82
        %p204 = pneg %p79
        %p205 = pneg %p103
        %p206 = pneg %p100
        %p207 = pneg %p124
        %p208 = pneg %p121
        %p209 = pneg %p150
        %p210 = pneg %p147
        %s211 = sand.u32 %s137, 1
        %s212 = scalar_lea.sflag [#allocation3], %s211
        %s213 = sand.u32 %s137, 1
        %s214 = smul.addr %s213, 8
        %s215 = scalar_lea.vmem [#allocation2], %s214
        %p216 = scmp.lt.s32.totalorder %s19, 1
        %s217 = scalar_select %p216, %s19, 1
        %s218 = smul.addr %s217, 8
        %s219 = scalar_lea.vmem %s0, %s218
        %v221 = vld [vmem:[%s219] sm:$0xff]
        %v222 = vpack.c.bf16 %v221, %v221
        %v223 = vld [vmem:[%s1] sm:$0xff]
        %v224 = vld [vmem:[%s1 + $0x8] sm:$0xff]
        %v225 = vld [vmem:[%s1 + $0x10] sm:$0xff]
        %v226 = vld [vmem:[%s1 + $0x18] sm:$0xff]
        %v227 = vld [vmem:[%s1 + $0x20] sm:$0xff]
        %v228 = vld [vmem:[%s1 + $0x28] sm:$0xff]
        %v229 = vld [vmem:[%s1 + $0x30] sm:$0xff]
        %v230 = vld [vmem:[%s1 + $0x38] sm:$0xff]
        %v231 = vld [vmem:[%s1 + $0x40] sm:$0xff]
        %v232 = vld [vmem:[%s1 + $0x48] sm:$0xff]
        %v233 = vld [vmem:[%s1 + $0x50] sm:$0xff]
        %v234 = vld [vmem:[%s1 + $0x58] sm:$0xff]
        %v235 = vld [vmem:[%s1 + $0x60] sm:$0xff]
        %v236 = vld [vmem:[%s1 + $0x68] sm:$0xff]
        %v237 = vld [vmem:[%s1 + $0x70] sm:$0xff]
        %v238 = vld [vmem:[%s1 + $0x78] sm:$0xff]
        %v239 = vld [vmem:[%s2] sm:$0x3]
        %v241 = vlaneseq
        %v242 = vshrl.u32 %v241, 7
        %v243 = vsub.s32 0, %v242
        %v244 = vrot.slane %v239, %v243
        %v245 = vlaneseq
        %v246 = vshrl.u32 %v245, 7
        %v247 = vsub.s32 1, %v246
        %v248 = vrot.slane %v239, %v247
        %v267 = vunpack.c.l.b16 %v223
        %v268 = vunpack.c.h.b16 %v223
        %v269 = vunpack.c.l.b16 %v224
        %v270 = vunpack.c.h.b16 %v224
        %v271 = vunpack.c.l.b16 %v225
        %v272 = vunpack.c.h.b16 %v225
        %v273 = vunpack.c.l.b16 %v226
        %v274 = vunpack.c.h.b16 %v226
        %v275 = vunpack.c.l.b16 %v227
        %v276 = vunpack.c.h.b16 %v227
        %v277 = vunpack.c.l.b16 %v228
        %v278 = vunpack.c.h.b16 %v228
        %v279 = vunpack.c.l.b16 %v229
        %v280 = vunpack.c.h.b16 %v229
        %v281 = vunpack.c.l.b16 %v230
        %v282 = vunpack.c.h.b16 %v230
        %v283 = vunpack.c.l.b16 %v231
        %v284 = vunpack.c.h.b16 %v231
        %v285 = vunpack.c.l.b16 %v232
        %v286 = vunpack.c.h.b16 %v232
        %v287 = vunpack.c.l.b16 %v233
        %v288 = vunpack.c.h.b16 %v233
        %v289 = vunpack.c.l.b16 %v234
        %v290 = vunpack.c.h.b16 %v234
        %v291 = vunpack.c.l.b16 %v235
        %v292 = vunpack.c.h.b16 %v235
        %v293 = vunpack.c.l.b16 %v236
        %v294 = vunpack.c.h.b16 %v236
        %v295 = vunpack.c.l.b16 %v237
        %v296 = vunpack.c.h.b16 %v237
        %v297 = vunpack.c.l.b16 %v238
        %v298 = vunpack.c.h.b16 %v238
        %v299 = vpack.c.b16 %v269, %v267
        %v300 = vpack.c.b16 %v270, %v268
        %v301 = vpack.c.b16 %v273, %v271
        %v302 = vpack.c.b16 %v274, %v272
        %v303 = vpack.c.b16 %v277, %v275
        %v304 = vpack.c.b16 %v278, %v276
        %v305 = vpack.c.b16 %v281, %v279
        %v306 = vpack.c.b16 %v282, %v280
        %v307 = vpack.c.b16 %v285, %v283
        %v308 = vpack.c.b16 %v286, %v284
        %v309 = vpack.c.b16 %v289, %v287
        %v310 = vpack.c.b16 %v290, %v288
        %v311 = vpack.c.b16 %v293, %v291
        %v312 = vpack.c.b16 %v294, %v292
        %v313 = vpack.c.b16 %v297, %v295
        %v314 = vpack.c.b16 %v298, %v296
        %331 = vmatprep.subr.bf16.mxu0 %v300
        %332 = vmatpush1.bf16.msra.mxu0 %v299
        %333 = vmatprep.subr.bf16.mxu0 %v302
        %334 = vmatpush1.bf16.msra.mxu0 %v301
        %335 = vmatprep.subr.bf16.mxu0 %v304
        %336 = vmatpush1.bf16.msra.mxu0 %v303
        %337 = vmatprep.subr.bf16.mxu0 %v306
        %338 = vmatpush1.bf16.msra.mxu0 %v305
        %339 = vmatprep.subr.bf16.mxu0 %v308
        %340 = vmatpush1.bf16.msra.mxu0 %v307
        %341 = vmatprep.subr.bf16.mxu0 %v310
        %342 = vmatpush1.bf16.msra.mxu0 %v309
        %343 = vmatprep.subr.bf16.mxu0 %v312
        %344 = vmatpush1.bf16.msra.mxu0 %v311
        %345 = vmatprep.subr.bf16.mxu0 %v314
        %346 = vmatpush1.bf16.msra.mxu0 %v313
        %347 = vmatprep.subr.bf16.mxu0 0
        %348 = vmatpush1.bf16.msra.mxu0 0
        %349 = vmatprep.subr.bf16.mxu0 0
        %350 = vmatpush1.bf16.msra.mxu0 0
        %351 = vmatprep.subr.bf16.mxu0 0
        %352 = vmatpush1.bf16.msra.mxu0 0
        %353 = vmatprep.subr.bf16.mxu0 0
        %354 = vmatpush1.bf16.msra.mxu0 0
        %355 = vmatprep.subr.bf16.mxu0 0
        %356 = vmatpush1.bf16.msra.mxu0 0
        %357 = vmatprep.subr.bf16.mxu0 0
        %358 = vmatpush1.bf16.msra.mxu0 0
        %359 = vmatprep.subr.bf16.mxu0 0
        %360 = vmatpush1.bf16.msra.mxu0 0
        %361 = vmatprep.subr.bf16.mxu0 0
        %362 = vmatpush1.bf16.msra.mxu0 0
        %363 = vmatprep.mubr.bf16.mxu0 0
        %364 = vmatmul.mubr.bf16.gmra.mrb[0].mxu0 %v222
        %v365 = vpop.f32.mrb[0].mxu0
        %v366 = vadd.f32 %v244, %v365
        %v367 = vpop.f32.mrb[0].mxu0
        %v368 = vadd.f32 %v248, %v367
        %v369 = vpop.f32.mrb[0].mxu0
        %v370 = vpop.f32.mrb[0].mxu0
        %371 = vdwg.mxu0
        %v372 = vmax.f32 %v366, 0.0
        %v373 = vmax.f32 %v368, 0.0
        %v374 = vpack.c.bf16 %v372, %v372
        %v375 = vpack.c.bf16 %v373, %v373
        %v376 = vld [vmem:[%s3] sm:$0xf]
        %v377 = vld [vmem:[%s3 + $0x4] sm:$0xf]
        %v378 = vld [vmem:[%s3 + $0x8] sm:$0xf]
        %v379 = vld [vmem:[%s3 + $0xc] sm:$0xf]
        %v380 = vld [vmem:[%s3 + $0x10] sm:$0xf]
        %v381 = vld [vmem:[%s3 + $0x14] sm:$0xf]
        %v382 = vld [vmem:[%s3 + $0x18] sm:$0xf]
        %v383 = vld [vmem:[%s3 + $0x1c] sm:$0xf]
        %v384 = vld [vmem:[%s3 + $0x20] sm:$0xf]
        %v385 = vld [vmem:[%s3 + $0x24] sm:$0xf]
        %v386 = vld [vmem:[%s3 + $0x28] sm:$0xf]
        %v387 = vld [vmem:[%s3 + $0x2c] sm:$0xf]
        %v388 = vld [vmem:[%s3 + $0x30] sm:$0xf]
        %v389 = vld [vmem:[%s3 + $0x34] sm:$0xf]
        %v390 = vld [vmem:[%s3 + $0x38] sm:$0xf]
        %v391 = vld [vmem:[%s3 + $0x3c] sm:$0xf]
        %v392 = vld [vmem:[%s3 + $0x40] sm:$0xf]
        %v393 = vld [vmem:[%s3 + $0x44] sm:$0xf]
        %v394 = vld [vmem:[%s3 + $0x48] sm:$0xf]
        %v395 = vld [vmem:[%s3 + $0x4c] sm:$0xf]
        %v396 = vld [vmem:[%s3 + $0x50] sm:$0xf]
        %v397 = vld [vmem:[%s3 + $0x54] sm:$0xf]
        %v398 = vld [vmem:[%s3 + $0x58] sm:$0xf]
        %v399 = vld [vmem:[%s3 + $0x5c] sm:$0xf]
        %v400 = vld [vmem:[%s3 + $0x60] sm:$0xf]
        %v401 = vld [vmem:[%s3 + $0x64] sm:$0xf]
        %v402 = vld [vmem:[%s3 + $0x68] sm:$0xf]
        %v403 = vld [vmem:[%s3 + $0x6c] sm:$0xf]
        %v404 = vld [vmem:[%s3 + $0x70] sm:$0xf]
        %v405 = vld [vmem:[%s3 + $0x74] sm:$0xf]
        %v406 = vld [vmem:[%s3 + $0x78] sm:$0xf]
        %v407 = vld [vmem:[%s3 + $0x7c] sm:$0xf]
        %v408 = vld [vmem:[%s4] sm:$0x1]
        %v410 = vlaneseq
        %v411 = vshrl.u32 %v410, 7
        %v412 = vsub.s32 0, %v411
        %v413 = vrot.slane %v408, %v412
        %v447 = vunpack.c.l.b16 %v376
        %v448 = vunpack.c.l.b16 %v377
        %v449 = vunpack.c.l.b16 %v378
        %v450 = vunpack.c.l.b16 %v379
        %v451 = vunpack.c.l.b16 %v380
        %v452 = vunpack.c.l.b16 %v381
        %v453 = vunpack.c.l.b16 %v382
        %v454 = vunpack.c.l.b16 %v383
        %v455 = vunpack.c.l.b16 %v384
        %v456 = vunpack.c.l.b16 %v385
        %v457 = vunpack.c.l.b16 %v386
        %v458 = vunpack.c.l.b16 %v387
        %v459 = vunpack.c.l.b16 %v388
        %v460 = vunpack.c.l.b16 %v389
        %v461 = vunpack.c.l.b16 %v390
        %v462 = vunpack.c.l.b16 %v391
        %v463 = vunpack.c.l.b16 %v392
        %v464 = vunpack.c.l.b16 %v393
        %v465 = vunpack.c.l.b16 %v394
        %v466 = vunpack.c.l.b16 %v395
        %v467 = vunpack.c.l.b16 %v396
        %v468 = vunpack.c.l.b16 %v397
        %v469 = vunpack.c.l.b16 %v398
        %v470 = vunpack.c.l.b16 %v399
        %v471 = vunpack.c.l.b16 %v400
        %v472 = vunpack.c.l.b16 %v401
        %v473 = vunpack.c.l.b16 %v402
        %v474 = vunpack.c.l.b16 %v403
        %v475 = vunpack.c.l.b16 %v404
        %v476 = vunpack.c.l.b16 %v405
        %v477 = vunpack.c.l.b16 %v406
        %v478 = vunpack.c.l.b16 %v407
        %v479 = vpack.c.b16 %v448, %v447
        %v480 = vpack.c.b16 %v450, %v449
        %v481 = vpack.c.b16 %v452, %v451
        %v482 = vpack.c.b16 %v454, %v453
        %v483 = vpack.c.b16 %v456, %v455
        %v484 = vpack.c.b16 %v458, %v457
        %v485 = vpack.c.b16 %v460, %v459
        %v486 = vpack.c.b16 %v462, %v461
        %v487 = vpack.c.b16 %v464, %v463
        %v488 = vpack.c.b16 %v466, %v465
        %v489 = vpack.c.b16 %v468, %v467
        %v490 = vpack.c.b16 %v470, %v469
        %v491 = vpack.c.b16 %v472, %v471
        %v492 = vpack.c.b16 %v474, %v473
        %v493 = vpack.c.b16 %v476, %v475
        %v494 = vpack.c.b16 %v478, %v477
        %511 = vmatprep.subr.bf16.mxu0 0
        %512 = vmatpush1.bf16.msra.mxu0 %v479
        %513 = vmatprep.subr.bf16.mxu0 0
        %514 = vmatpush1.bf16.msra.mxu0 %v480
        %515 = vmatprep.subr.bf16.mxu0 0
        %516 = vmatpush1.bf16.msra.mxu0 %v481
        %517 = vmatprep.subr.bf16.mxu0 0
        %518 = vmatpush1.bf16.msra.mxu0 %v482
        %519 = vmatprep.subr.bf16.mxu0 0
        %520 = vmatpush1.bf16.msra.mxu0 %v483
        %521 = vmatprep.subr.bf16.mxu0 0
        %522 = vmatpush1.bf16.msra.mxu0 %v484
        %523 = vmatprep.subr.bf16.mxu0 0
        %524 = vmatpush1.bf16.msra.mxu0 %v485
        %525 = vmatprep.subr.bf16.mxu0 0
        %526 = vmatpush1.bf16.msra.mxu0 %v486
        %527 = vmatprep.subr.bf16.mxu0 0
        %528 = vmatpush1.bf16.msra.mxu0 %v487
        %529 = vmatprep.subr.bf16.mxu0 0
        %530 = vmatpush1.bf16.msra.mxu0 %v488
        %531 = vmatprep.subr.bf16.mxu0 0
        %532 = vmatpush1.bf16.msra.mxu0 %v489
        %533 = vmatprep.subr.bf16.mxu0 0
        %534 = vmatpush1.bf16.msra.mxu0 %v490
        %535 = vmatprep.subr.bf16.mxu0 0
        %536 = vmatpush1.bf16.msra.mxu0 %v491
        %537 = vmatprep.subr.bf16.mxu0 0
        %538 = vmatpush1.bf16.msra.mxu0 %v492
        %539 = vmatprep.subr.bf16.mxu0 0
        %540 = vmatpush1.bf16.msra.mxu0 %v493
        %541 = vmatprep.subr.bf16.mxu0 0
        %542 = vmatpush1.bf16.msra.mxu0 %v494
        %543 = vmatprep.mubr.bf16.mxu0 %v375
        %544 = vmatmul.mubr.bf16.gmra.mrb[0].mxu0 %v374
        %v545 = vpop.f32.mrb[0].mxu0
        %v546 = vadd.f32 %v413, %v545
        %v547 = vpop.f32.mrb[0].mxu0
        %v548 = vpop.f32.mrb[0].mxu0
        %v549 = vpop.f32.mrb[0].mxu0
        %550 = vdwg.mxu0
        %vm551 = vcmask 523264
        %552 = vst.msk [vmem:[%s215] sm:$0xff] %vm551, %v546
        %s553 = sand.u32 %s137, 1
        %s554 = scalar_lea.sflag [#allocation3], %s553
        %s555 = sand.u32 %s137, 1
        %s556 = smul.addr %s555, 8
        %s557 = scalar_lea.vmem [#allocation2], %s556
        // Predicated region
        $region41: #{tpu_custom_call.1} parent=39 // pred_check
          %p558 = pneg %p147
        $region42: #{tpu_custom_call.1} parent=39 // pred_check_branch
          %560 = sbr.rel (%p558) target = $region44
        $region43: #{tpu_custom_call.1} parent=39 // pred_region
          %s562 = ssub.s32 128, 128
          %563 = vsyncadd %s554, %s562
          %s564 = smul.addr %s19, 128
          %s565 = scalar_lea.hbm %s5, %s564
          %s567 = sshll.u32 %s557, 4
          %s568 = int_to_ptr.vmem [resolvable:$true] %s567
          %570 = dma.vmem_to_hbm [thread:$0]  %s568, 128, %s565, %s554
        $region44: #{tpu_custom_call.1} parent=39 // pred_fallthru
          _
      $region40: #{tpu_custom_call.1} parent=5 // pred_fallthru
        _
      %p571 = scmp.le.s32.totalorder 2, %s14
      // Predicated region
      $region45: #{tpu_custom_call.1} parent=5 // pred_check
        %p572 = pneg %p571
      $region46: #{tpu_custom_call.1} parent=5 // pred_check_branch
        %574 = sbr.rel (%p572) target = $region48
      $region47: #{tpu_custom_call.1} parent=5 // pred_region
        %s575 = ssub.s32 %s14, 2
        // Predicated region
        $region49: #{tpu_custom_call.1} parent=47 // pred_check
          %p576 = pneg %p153
        $region50: #{tpu_custom_call.1} parent=47 // pred_check_branch
          %578 = sbr.rel (%p576) target = $region52
        $region51: #{tpu_custom_call.1} parent=47 // pred_region
          %s579 = sand.u32 %s138, 1
          %s580 = scalar_lea.sflag [#allocation3], %s579
          %s581 = sand.u32 %s138, 1
          %s582 = smul.addr %s581, 8
          %s583 = scalar_lea.vmem [#allocation2], %s582
          %584 = dma.done %s580, 128
        $region52: #{tpu_custom_call.1} parent=47 // pred_fallthru
          _
      $region48: #{tpu_custom_call.1} parent=5 // pred_fallthru
        _
    $region6: #{tpu_custom_call.1} parent=1 // loop_footer
      %s18 = sadd.s32 1, %s14
    $region7: #{tpu_custom_call.1} parent=1 // loop_footer_branch
      %13 = sbr.rel target = $region3
    $region8: #{tpu_custom_call.1} parent=1 // loop_exit
      _
    %585 = vsyncpa [#allocation3], 1
    %s586 = scalar_lea.sflag [#allocation3], 1
    %587 = vsyncpa %s586, 1

</llo_original>
